<compile_context>
chip_gen: v5e
topology: v5e:2x2
jax: 0.10.0
libtpu: 0.0.40
codegen_flags: <defaults>
</compile_context>

<pallas_src>
import functools

import jax
import jax.numpy as jnp
from jax.experimental import pallas as pl
from jax.experimental.pallas import tpu as pltpu

_NEG = -1e30  # "minus infinity" that never produces inf-inf NaNs

_RESIDENT_TEXT_BYTES = 12 * 1024 * 1024   # x2 pipeline buffers => <=24 MiB (v7x-safe)
_VMEM_LIMIT_BYTES = 48 * 1024 * 1024      # v7x physical VMEM = 64 MiB; v5e/v6e = 128 MiB


def _round_up(x, m):
    return (x + m - 1) // m * m


def _cdiv(a, b):
    return (a + b - 1) // b


# --------------------------------------------------------------------------
# Pass 1: online LSE + per-row target-logit gather over class tiles.
# --------------------------------------------------------------------------
def _lse_loss_kernel(feat_ref, text_ref, tgt_ref, lse_ref, rowloss_ref,
                     m_sc, l_sc, t_sc, *, num_classes, tile_c, need_mask,
                     text_resident):
    j = pl.program_id(1)

    @pl.when(j == 0)
    def _():
        m_sc[...] = jnp.full_like(m_sc, _NEG)
        l_sc[...] = jnp.zeros_like(l_sc)
        t_sc[...] = jnp.zeros_like(t_sc)

    if text_resident:
        # Whole (D, C_pad) text block is VMEM-resident; slice the current
        # class tile (lane-aligned start).
        t = text_ref[:, pl.ds(pl.multiple_of(j * tile_c, 128), tile_c)]
    else:
        t = text_ref[...]

    # bf16 x bf16 on the MXU, f32 accumulation.  Temperature is already folded
    # into the feature operand, and text arrives in native [K, N] layout.
    logits = jnp.dot(feat_ref[...], t, preferred_element_type=jnp.float32)  # [TB, TC]

    # iota is needed for the per-tile target gather regardless of masking.
    col_ids = j * tile_c + jax.lax.broadcasted_iota(jnp.int32, logits.shape, 1)
    if need_mask:  # static: skipped entirely when C % TC == 0
        logits = jnp.where(col_ids < num_classes, logits, _NEG)

    # Online softmax statistics (running max / running sum).
    m_new = jnp.maximum(m_sc[...], jnp.max(logits, axis=1, keepdims=True))
    alpha = jnp.exp(m_sc[...] - m_new)
    l_sc[...] = alpha * l_sc[...] + jnp.sum(jnp.exp(logits - m_new),
                                            axis=1, keepdims=True)
    m_sc[...] = m_new

    # Per-tile target-logit gather (no full [B, C] one-hot sweep).
    t_sc[...] += jnp.sum(jnp.where(col_ids == tgt_ref[...], logits, 0.0),
                         axis=1, keepdims=True)

    @pl.when(j == pl.num_programs(1) - 1)
    def _():
        lse = m_sc[...] + jnp.log(l_sc[...])
        lse_ref[...] = lse
        rowloss_ref[...] = lse - t_sc[...]


# --------------------------------------------------------------------------
# Pass 2: softmax = exp(logits - lse), lane-dense tiles, no masking, no divide.
# --------------------------------------------------------------------------
def _softmax_kernel(feat_ref, text_ref, lse_ref, out_ref, *, tile_c, text_resident):
    j = pl.program_id(1)
    if text_resident:
        t = text_ref[:, pl.ds(pl.multiple_of(j * tile_c, 128), tile_c)]
    else:
        t = text_ref[...]
    logits = jnp.dot(feat_ref[...], t, preferred_element_type=jnp.float32)
    out_ref[...] = jnp.exp(logits - lse_ref[...])   # padded cols sliced off in wrapper


# --------------------------------------------------------------------------
# Wrapper
# --------------------------------------------------------------------------
def classify_anything_loss(features, text_features, targets, *, temperature,
                           tb_target=512, tc_target=1024):
    """Returns ({'classify_anything_loss': loss_scalar}, cosim_softmax [B, C])."""
    B, D = features.shape
    C, D2 = text_features.shape
    assert D == D2, "feature dims must match"

    # ---- batch tiling: multiples of 16 (bf16 native sublane tiling), balanced ----
    B16 = _round_up(B, 16)
    n_bt = _cdiv(B16, tb_target)
    # v7x has 2 TensorCores and only the "parallel" axis shards across them:
    # if the whole batch would fit one tile but is reasonably big, split in two.
    if n_bt == 1 and B16 >= 256:
        n_bt = 2
    TB = _round_up(_cdiv(B16, n_bt), 16)
    B_pad = n_bt * TB

    # ---- class tiling: multiples of 128 (lane-dense), balanced ----
    C128 = _round_up(C, 128)
    n_ct = _cdiv(C128, tc_target)
    TC = _round_up(_cdiv(C128, n_ct), 128)
    C_pad = n_ct * TC

    need_mask = (C_pad != C)
    # Keep the whole transposed text matrix VMEM-resident when small enough
    # (budget accounts for double-buffered pipeline allocation).
    text_resident = (n_ct > 1) and (C_pad * D * 2 <= _RESIDENT_TEXT_BYTES)

    # Fold 1/temperature into the bf16 feature cast (saves a (TB,TC) f32 vmul
    # per grid step in both passes).  Text pre-transposed to (D, C_pad) so the
    # MXU sees a plain [M,K] x [K,N] matmul.
    feats = jnp.zeros((B_pad, D), jnp.bfloat16).at[:B].set(
        (features / temperature).astype(jnp.bfloat16))
    texts = jnp.zeros((D, C_pad), jnp.bfloat16).at[:, :C].set(
        text_features.T.astype(jnp.bfloat16))
    tgts = jnp.zeros((B_pad, 1), jnp.int32).at[:B, 0].set(targets.astype(jnp.int32))

    # ---- shared BlockSpecs ----
    feat_spec = pl.BlockSpec((TB, D), lambda i, j: (i, 0))   # resident over j
    col_spec = pl.BlockSpec((TB, 1), lambda i, j: (i, 0))    # targets / lse / loss
    if text_resident:
        text_spec = pl.BlockSpec((D, C_pad), lambda i, j: (0, 0))   # fetched once
        text_read_factor = 1
    else:
        text_kwargs = {}
        if n_ct >= 3:
            # v5e (lowest HBM BW): 3-deep buffer on the streamed text tiles.
            text_kwargs["pipeline_mode"] = pl.Buffered(3)
        text_spec = pl.BlockSpec((D, TC), lambda i, j: (0, j), **text_kwargs)
        text_read_factor = n_bt

    # ---- pass 1: per-row lse + per-row loss ----
    lse, row_loss = pl.pallas_call(
        functools.partial(_lse_loss_kernel, num_classes=C, tile_c=TC,
                          need_mask=need_mask, text_resident=text_resident),
        grid_spec=pltpu.PrefetchScalarGridSpec(
            num_scalar_prefetch=0,
            grid=(n_bt, n_ct),
            in_specs=[feat_spec, text_spec, col_spec],
            out_specs=(col_spec, col_spec),
            scratch_shapes=[pltpu.VMEM((TB, 1), jnp.float32),
                            pltpu.VMEM((TB, 1), jnp.float32),
                            pltpu.VMEM((TB, 1), jnp.float32)]),
        out_shape=(jax.ShapeDtypeStruct((B_pad, 1), jnp.float32),
                   jax.ShapeDtypeStruct((B_pad, 1), jnp.float32)),
        compiler_params=pltpu.CompilerParams(
            dimension_semantics=("parallel", "arbitrary"),
            vmem_limit_bytes=_VMEM_LIMIT_BYTES),
        cost_estimate=pl.CostEstimate(
            flops=2 * B_pad * C_pad * D,
            transcendentals=B_pad * C_pad,
            bytes_accessed=(B_pad * D * 2
                            + text_read_factor * C_pad * D * 2
                            + 3 * B_pad * 4)),
    )(feats, texts, tgts)

    # ---- pass 2: lane-dense softmax output (f32; bf16 is an optional follow-up) ----
    softmax_pad = pl.pallas_call(
        functools.partial(_softmax_kernel, tile_c=TC, text_resident=text_resident),
        grid_spec=pltpu.PrefetchScalarGridSpec(
            num_scalar_prefetch=0,
            grid=(n_bt, n_ct),
            in_specs=[feat_spec, text_spec, col_spec],
            out_specs=pl.BlockSpec((TB, TC), lambda i, j: (i, j)),
        ),
        out_shape=jax.ShapeDtypeStruct((B_pad, C_pad), jnp.float32),
        compiler_params=pltpu.CompilerParams(
            dimension_semantics=("parallel", "parallel"),
            vmem_limit_bytes=_VMEM_LIMIT_BYTES),
        cost_estimate=pl.CostEstimate(
            flops=2 * B_pad * C_pad * D,
            transcendentals=B_pad * C_pad,
            bytes_accessed=(B_pad * D * 2
                            + text_read_factor * C_pad * D * 2
                            + B_pad * 4 + B_pad * C_pad * 4)),
    )(feats, texts, lse)

    loss = jnp.mean(row_loss[:B, 0])              # mean reduction in the wrapper
    cosim_softmax = softmax_pad[:B, :C]           # drop padded rows / classes
    return {"classify_anything_loss": loss}, cosim_softmax


# --------------------------------------------------------------------------
# Pure-JAX reference (same bf16 rounding / scaling order as the kernel).
# --------------------------------------------------------------------------
def _reference(features, text_features, targets, temperature):
    f = (features / temperature).astype(jnp.bfloat16).astype(jnp.float32)
    t = text_features.astype(jnp.bfloat16).astype(jnp.float32)
    logits = f @ t.T
    softmax = jax.nn.softmax(logits, axis=1)
    lse = jax.nn.logsumexp(logits, axis=1)
    tgt_logit = jnp.take_along_axis(
        logits, targets[:, None].astype(jnp.int32), axis=1)[:, 0]
    return jnp.mean(lse - tgt_logit), softmax


if __name__ == "__main__":
    key = jax.random.PRNGKey(0)
    B, C, D = 8, 16, 32          # batch, num_class, feature dim
    TEMPERATURE = 0.07

    k1, k2, k3 = jax.random.split(key, 3)
    features = jax.random.normal(k1, (B, D), dtype=jnp.float32)
    text_features = jax.random.normal(k2, (C, D), dtype=jnp.float32)
    targets = jax.random.randint(k3, (B,), 0, C, dtype=jnp.int32)

    out_dict, cosim_softmax = classify_anything_loss(
        features, text_features, targets, temperature=TEMPERATURE)
    loss = out_dict["classify_anything_loss"]
    jax.block_until_ready((loss, cosim_softmax))

    ref_loss, ref_softmax = _reference(features, text_features, targets, TEMPERATURE)
    assert jnp.allclose(loss, ref_loss, atol=1e-4, rtol=1e-4), (loss, ref_loss)
    assert jnp.allclose(cosim_softmax, ref_softmax, atol=1e-4, rtol=1e-4)

    print("KERNEL_OK")
</pallas_src>

<mosaic_0001>
module attributes {stable_mosaic.version = 11 : i64} {
  func.func @_lse_loss_kernel(%arg0: i32, %arg1: i32, %arg2: memref<16x32xbf16, #tpu.memory_space<vmem>>, %arg3: memref<32x128xbf16, #tpu.memory_space<vmem>>, %arg4: memref<16x1xi32, #tpu.memory_space<vmem>>, %arg5: memref<16x1xf32, #tpu.memory_space<vmem>>, %arg6: memref<16x1xf32, #tpu.memory_space<vmem>>, %arg7: memref<16x1xf32, #tpu.memory_space<vmem>>, %arg8: memref<16x1xf32, #tpu.memory_space<vmem>>, %arg9: memref<16x1xf32, #tpu.memory_space<vmem>>) attributes {dimension_semantics = [#tpu.dimension_semantics<parallel>, #tpu.dimension_semantics<arbitrary>], iteration_bounds = array<i64: 1, 1>, scalar_prefetch = 0 : i64, scratch_operands = 3 : i64, tpu.core_type = #tpu.core_type<tc>, window_params = [{transform_indices = @transform_0, window_bounds = array<i64: 16, 32>}, {transform_indices = @transform_1, window_bounds = array<i64: 32, 128>}, {transform_indices = @transform_2, window_bounds = array<i64: 16, 1>}, {transform_indices = @transform_3, window_bounds = array<i64: 16, 1>}, {transform_indices = @transform_4, window_bounds = array<i64: 16, 1>}]} {
    %c0_i32 = arith.constant 0 : i32
    %0 = arith.cmpi eq, %arg1, %c0_i32 : i32
    %1 = arith.extui %0 : i1 to i32
    %c0_i32_0 = arith.constant 0 : i32
    %2 = arith.cmpi ne, %1, %c0_i32_0 : i32
    scf.if %2 {
      %cst_27 = arith.constant -1.000000e+30 : f32
      %44 = vector.broadcast %cst_27 : f32 to vector<16x1xf32>
      %c0_28 = arith.constant 0 : index
      %c0_29 = arith.constant 0 : index
      %45 = vector.load %arg7[%c0_28, %c0_29] : memref<16x1xf32, #tpu.memory_space<vmem>>, vector<16x1xf32>
      tpu.vector_store %arg7[%c0_28, %c0_29], %44 {strides = array<i32>} : memref<16x1xf32, #tpu.memory_space<vmem>>, vector<16x1xf32>,
      %cst_30 = arith.constant 0.000000e+00 : f32
      %46 = vector.broadcast %cst_30 : f32 to vector<16x1xf32>
      %c0_31 = arith.constant 0 : index
      %c0_32 = arith.constant 0 : index
      %47 = vector.load %arg8[%c0_31, %c0_32] : memref<16x1xf32, #tpu.memory_space<vmem>>, vector<16x1xf32>
      tpu.vector_store %arg8[%c0_31, %c0_32], %46 {strides = array<i32>} : memref<16x1xf32, #tpu.memory_space<vmem>>, vector<16x1xf32>,
      %cst_33 = arith.constant 0.000000e+00 : f32
      %48 = vector.broadcast %cst_33 : f32 to vector<16x1xf32>
      %c0_34 = arith.constant 0 : index
      %c0_35 = arith.constant 0 : index
      %49 = vector.load %arg9[%c0_34, %c0_35] : memref<16x1xf32, #tpu.memory_space<vmem>>, vector<16x1xf32>
      tpu.vector_store %arg9[%c0_34, %c0_35], %48 {strides = array<i32>} : memref<16x1xf32, #tpu.memory_space<vmem>>, vector<16x1xf32>,
    } else {
    }
    %c0 = arith.constant 0 : index
    %c0_1 = arith.constant 0 : index
    %3 = vector.load %arg3[%c0, %c0_1] : memref<32x128xbf16, #tpu.memory_space<vmem>>, vector<32x128xbf16>
    %c0_2 = arith.constant 0 : index
    %c0_3 = arith.constant 0 : index
    %4 = vector.load %arg2[%c0_2, %c0_3] : memref<16x32xbf16, #tpu.memory_space<vmem>>, vector<16x32xbf16>
    %cst = arith.constant dense<0.000000e+00> : vector<16x128xf32>
    %5 = tpu.matmul %4, %3, %cst {dimension_numbers = #tpu.dot_dimension_numbers<[1], [0], [0], [1], [0, 0, 1, 1], [], []>} : vector<16x32xbf16>, vector<32x128xbf16>, vector<16x128xf32> -> vector<16x128xf32>
    %c128_i32 = arith.constant 128 : i32
    %6 = arith.muli %arg1, %c128_i32 : i32
    %7 = tpu.iota {dimensions = array<i32: 1>} : vector<16x128xi32>
    %8 = vector.broadcast %6 : i32 to vector<16x128xi32>
    %9 = arith.addi %8, %7 : vector<16x128xi32>
    %c16_i32 = arith.constant 16 : i32
    %10 = vector.broadcast %c16_i32 : i32 to vector<16x128xi32>
    %11 = arith.cmpi slt, %9, %10 : vector<16x128xi32>
    %cst_4 = arith.constant -1.000000e+30 : f32
    %12 = vector.broadcast %cst_4 : f32 to vector<16x128xf32>
    %13 = arith.select %11, %5, %12 : vector<16x128xi1>, vector<16x128xf32>
    %c0_5 = arith.constant 0 : index
    %c0_6 = arith.constant 0 : index
    %14 = vector.load %arg7[%c0_5, %c0_6] : memref<16x1xf32, #tpu.memory_space<vmem>>, vector<16x1xf32>
    %cst_7 = arith.constant dense<0xFF800000> : vector<16xf32>
    %15 = vector.multi_reduction <maximumf>, %13, %cst_7 [1] : vector<16x128xf32> to vector<16xf32>
    %16 = vector.shape_cast %15 : vector<16xf32> to vector<16x1xf32>
    %17 = arith.maximumf %14, %16 : vector<16x1xf32>
    %c0_8 = arith.constant 0 : index
    %c0_9 = arith.constant 0 : index
    %18 = vector.load %arg7[%c0_8, %c0_9] : memref<16x1xf32, #tpu.memory_space<vmem>>, vector<16x1xf32>
    %19 = arith.subf %18, %17 : vector<16x1xf32>
    %20 = math.exp %19 : vector<16x1xf32>
    %c0_10 = arith.constant 0 : index
    %c0_11 = arith.constant 0 : index
    %21 = vector.load %arg8[%c0_10, %c0_11] : memref<16x1xf32, #tpu.memory_space<vmem>>, vector<16x1xf32>
    %22 = arith.mulf %20, %21 : vector<16x1xf32>
    %23 = vector.broadcast %17 : vector<16x1xf32> to vector<16x128xf32>
    %24 = arith.subf %13, %23 : vector<16x128xf32>
    %25 = math.exp %24 : vector<16x128xf32>
    %cst_12 = arith.constant dense<0.000000e+00> : vector<16xf32>
    %26 = vector.multi_reduction <add>, %25, %cst_12 [1] : vector<16x128xf32> to vector<16xf32>
    %27 = vector.shape_cast %26 : vector<16xf32> to vector<16x1xf32>
    %28 = arith.addf %22, %27 : vector<16x1xf32>
    %c0_13 = arith.constant 0 : index
    %c0_14 = arith.constant 0 : index
    %29 = vector.load %arg8[%c0_13, %c0_14] : memref<16x1xf32, #tpu.memory_space<vmem>>, vector<16x1xf32>
    tpu.vector_store %arg8[%c0_13, %c0_14], %28 {strides = array<i32>} : memref<16x1xf32, #tpu.memory_space<vmem>>, vector<16x1xf32>,
    %c0_15 = arith.constant 0 : index
    %c0_16 = arith.constant 0 : index
    %30 = vector.load %arg7[%c0_15, %c0_16] : memref<16x1xf32, #tpu.memory_space<vmem>>, vector<16x1xf32>
    tpu.vector_store %arg7[%c0_15, %c0_16], %17 {strides = array<i32>} : memref<16x1xf32, #tpu.memory_space<vmem>>, vector<16x1xf32>,
    %c0_17 = arith.constant 0 : index
    %c0_18 = arith.constant 0 : index
    %31 = vector.load %arg9[%c0_17, %c0_18] : memref<16x1xf32, #tpu.memory_space<vmem>>, vector<16x1xf32>
    %c0_19 = arith.constant 0 : index
    %c0_20 = arith.constant 0 : index
    %32 = vector.load %arg4[%c0_19, %c0_20] : memref<16x1xi32, #tpu.memory_space<vmem>>, vector<16x1xi32>
    %33 = vector.broadcast %32 : vector<16x1xi32> to vector<16x128xi32>
    %34 = arith.cmpi eq, %9, %33 : vector<16x128xi32>
    %cst_21 = arith.constant 0.000000e+00 : f32
    %35 = vector.broadcast %cst_21 : f32 to vector<16x128xf32>
    %36 = arith.select %34, %13, %35 : vector<16x128xi1>, vector<16x128xf32>
    %cst_22 = arith.constant dense<0.000000e+00> : vector<16xf32>
    %37 = vector.multi_reduction <add>, %36, %cst_22 [1] : vector<16x128xf32> to vector<16xf32>
    %38 = vector.shape_cast %37 : vector<16xf32> to vector<16x1xf32>
    %39 = arith.addf %31, %38 : vector<16x1xf32>
    %c0_23 = arith.constant 0 : index
    %c0_24 = arith.constant 0 : index
    %40 = vector.load %arg9[%c0_23, %c0_24] : memref<16x1xf32, #tpu.memory_space<vmem>>, vector<16x1xf32>
    tpu.vector_store %arg9[%c0_23, %c0_24], %39 {strides = array<i32>} : memref<16x1xf32, #tpu.memory_space<vmem>>, vector<16x1xf32>,
    %c0_i32_25 = arith.constant 0 : i32
    %41 = arith.cmpi eq, %arg1, %c0_i32_25 : i32
    %42 = arith.extui %41 : i1 to i32
    %c0_i32_26 = arith.constant 0 : i32
    %43 = arith.cmpi ne, %42, %c0_i32_26 : i32
    scf.if %43 {
      %c0_27 = arith.constant 0 : index
      %c0_28 = arith.constant 0 : index
      %44 = vector.load %arg7[%c0_27, %c0_28] : memref<16x1xf32, #tpu.memory_space<vmem>>, vector<16x1xf32>
      %c0_29 = arith.constant 0 : index
      %c0_30 = arith.constant 0 : index
      %45 = vector.load %arg8[%c0_29, %c0_30] : memref<16x1xf32, #tpu.memory_space<vmem>>, vector<16x1xf32>
      %46 = math.log %45 : vector<16x1xf32>
      %47 = arith.addf %44, %46 : vector<16x1xf32>
      %c0_31 = arith.constant 0 : index
      %c0_32 = arith.constant 0 : index
      %48 = vector.load %arg5[%c0_31, %c0_32] : memref<16x1xf32, #tpu.memory_space<vmem>>, vector<16x1xf32>
      tpu.vector_store %arg5[%c0_31, %c0_32], %47 {strides = array<i32>} : memref<16x1xf32, #tpu.memory_space<vmem>>, vector<16x1xf32>,
      %c0_33 = arith.constant 0 : index
      %c0_34 = arith.constant 0 : index
      %49 = vector.load %arg9[%c0_33, %c0_34] : memref<16x1xf32, #tpu.memory_space<vmem>>, vector<16x1xf32>
      %50 = arith.subf %47, %49 : vector<16x1xf32>
      %c0_35 = arith.constant 0 : index
      %c0_36 = arith.constant 0 : index
      %51 = vector.load %arg6[%c0_35, %c0_36] : memref<16x1xf32, #tpu.memory_space<vmem>>, vector<16x1xf32>
      tpu.vector_store %arg6[%c0_35, %c0_36], %50 {strides = array<i32>} : memref<16x1xf32, #tpu.memory_space<vmem>>, vector<16x1xf32>,
    } else {
    }
    return
  }
  func.func @transform_0(%arg0: i32, %arg1: i32) -> (i32, i32) {
    %c0_i32 = arith.constant 0 : i32
    %c0_i32_0 = arith.constant 0 : i32
    return %arg0, %c0_i32 : i32, i32
  }
  func.func @transform_1(%arg0: i32, %arg1: i32) -> (i32, i32) {
    %c0_i32 = arith.constant 0 : i32
    %c0_i32_0 = arith.constant 0 : i32
    return %c0_i32, %arg1 : i32, i32
  }
  func.func @transform_2(%arg0: i32, %arg1: i32) -> (i32, i32) {
    %c0_i32 = arith.constant 0 : i32
    %c0_i32_0 = arith.constant 0 : i32
    return %arg0, %c0_i32 : i32, i32
  }
  func.func @transform_3(%arg0: i32, %arg1: i32) -> (i32, i32) {
    %c0_i32 = arith.constant 0 : i32
    %c0_i32_0 = arith.constant 0 : i32
    return %arg0, %c0_i32 : i32, i32
  }
  func.func @transform_4(%arg0: i32, %arg1: i32) -> (i32, i32) {
    %c0_i32 = arith.constant 0 : i32
    %c0_i32_0 = arith.constant 0 : i32
    return %arg0, %c0_i32 : i32, i32
  }
}

</mosaic_0001>

<llo_original>
// kernel: tpu_custom_call.1
$region0: #{tpu_custom_call.1}
  #allocation0 [shape = 'u32[]', space=smem, size = 0x4, offset = 0x4, fixed_abs, tag = 'smem constant byte address 0x4 - core index']
  #allocation1 [shape = 'u32[72,128]{1,0:T(1,128)}', space=vmem, size = 0x9000, scoped, tag = 'internal scratch']
  #allocation2 [shape = 'f32[16,1]{1,0:T(8,128)}', space=vmem, size = 0x2000, scoped, tag = 'scratch operand']
  #allocation3 [shape = 'f32[16,1]{1,0:T(8,128)}', space=vmem, size = 0x2000, scoped, tag = 'scratch operand']
  #allocation4 [shape = 'f32[16,1]{1,0:T(8,128)}', space=vmem, size = 0x2000, scoped, tag = 'scratch operand']
  %s0 = inlined_call_operand.hbm [shape: bf16[16,32], index: 0, kind: input, shape index: {}]
  %s1 = inlined_call_operand.vmem [shape: bf16[32,128], index: 1, kind: input, shape index: {}]
  %s2 = inlined_call_operand.vmem [shape: s32[16,1], index: 2, kind: input, shape index: {}]
  %s3 = inlined_call_operand.vmem [shape: f32[16,1], index: 3, kind: output, shape index: {0}]
  %s4 = inlined_call_operand.vmem [shape: f32[16,1], index: 4, kind: output, shape index: {1}]
  %5 = xla_tuple %s3, %s4
  %s6 = sld [smem:[#allocation0]]
  $region42: #{tpu_custom_call.1} parent=0
    _
  %s8 = ssub.s32 1, %s6
  %s9 = scalar_select 0, %s8, %s6
  $region1: #{tpu_custom_call.1} parent=0
    #allocation5 [shape = 'u8[4096]{0}', space=vmem, size = 0x1000, scoped, tag = 'input window, operand 0, single buffered']
    #allocation6 [shape = 's32[1]{0}', space=sflag, size = 0x4, scoped, tag = 'scoped memory for tpu_custom_call.1']
    %10 = vsyncpa [#allocation6], 0
    // Predicated region
    $region2: #{tpu_custom_call.1} parent=1 // pred_check
      _
    $region3: #{tpu_custom_call.1} parent=1 // pred_check_branch
      %12 = sbr.rel (0) target = $region5
    $region4: #{tpu_custom_call.1} parent=1 // pred_region
      %14 = vsyncadd [#allocation6], 0
      %s15 = sshll.u32 %s0, 4
      %s16 = int_to_ptr.hbm [resolvable:$true] %s15
      %s17 = sshll.u32 [#allocation5], 4
      %s18 = int_to_ptr.vmem [resolvable:$true] %s17
      %23 = dma.hbm_to_vmem [thread:$0]  %s16, 128, %s18, [#allocation6], 64, 64, 4
    $region5: #{tpu_custom_call.1} parent=1 // pred_fallthru
      _
    // Predicated region
    $region6: #{tpu_custom_call.1} parent=1 // pred_check
      _
    $region7: #{tpu_custom_call.1} parent=1 // pred_check_branch
      %25 = sbr.rel (0) target = $region9
    $region8: #{tpu_custom_call.1} parent=1 // pred_region
      _
    $region9: #{tpu_custom_call.1} parent=1 // pred_fallthru
      _
    // Predicated region
    $region10: #{tpu_custom_call.1} parent=1 // pred_check
      _
    $region11: #{tpu_custom_call.1} parent=1 // pred_check_branch
      %27 = sbr.rel (0) target = $region13
    $region12: #{tpu_custom_call.1} parent=1 // pred_region
      _
    $region13: #{tpu_custom_call.1} parent=1 // pred_fallthru
      _
    // Predicated region
    $region14: #{tpu_custom_call.1} parent=1 // pred_check
      _
    $region15: #{tpu_custom_call.1} parent=1 // pred_check_branch
      %29 = sbr.rel (0) target = $region17
    $region16: #{tpu_custom_call.1} parent=1 // pred_region
      %31 = dma.done [#allocation6], 128
    $region17: #{tpu_custom_call.1} parent=1 // pred_fallthru
      _
    %p33 = scmp.eq.s32.totalorder 0, 0
    // Predicated region
    $region18: #{tpu_custom_call.1} parent=1 // pred_check
      %p34 = pneg %p33
    $region19: #{tpu_custom_call.1} parent=1 // pred_check_branch
      %36 = sbr.rel (%p34) target = $region21
    $region20: #{tpu_custom_call.1} parent=1 // pred_region
      %vm37 = vcmask 7168
      %38 = vst.msk [vmem:[#allocation2] sm:$0xff] %vm37, -1e+30
      %39 = vst.msk [vmem:[#allocation2 + $0x8] sm:$0xff] %vm37, -1e+30
      %40 = vst.msk [vmem:[#allocation3] sm:$0xff] %vm37, 0.0
      %41 = vst.msk [vmem:[#allocation3 + $0x8] sm:$0xff] %vm37, 0.0
      %42 = vst.msk [vmem:[#allocation4] sm:$0xff] %vm37, 0.0
      %43 = vst.msk [vmem:[#allocation4 + $0x8] sm:$0xff] %vm37, 0.0
    $region21: #{tpu_custom_call.1} parent=1 // pred_fallthru
      _
    %v44 = vld [vmem:[%s1] sm:$0xf]
    %v45 = vld [vmem:[%s1 + $0x4] sm:$0xf]
    %v46 = vld [vmem:[%s1 + $0x8] sm:$0xf]
    %v47 = vld [vmem:[%s1 + $0xc] sm:$0xf]
    %v48 = vld [vmem:[#allocation5] sm:$0xf]
    %v49 = vld [vmem:[#allocation5 + $0x4] sm:$0xf]
    %v52 = vunpack.c.l.b16 %v48
    %v53 = vunpack.c.l.b16 %v49
    %v54 = vpack.c.b16 %v53, %v52
    %v59 = vunpack.c.l.b16 %v44
    %v60 = vunpack.c.l.b16 %v45
    %v61 = vunpack.c.l.b16 %v46
    %v62 = vunpack.c.l.b16 %v47
    %v63 = vpack.c.b16 %v60, %v59
    %v64 = vpack.c.b16 %v62, %v61
    %vm67 = vcmask 261120
    %v69 = vsel %vm67, %v54, 0
    %71 = vmatpush.bf16.msra.mxu0 0
    %72 = vmatpush.bf16.msra.mxu0 0
    %73 = vmatpush.bf16.msra.mxu0 0
    %74 = vmatpush.bf16.msra.mxu0 0
    %75 = vmatpush.bf16.msra.mxu0 0
    %76 = vmatpush.bf16.msra.mxu0 0
    %77 = vmatpush.bf16.msra.mxu0 %v64
    %78 = vmatpush.bf16.msra.mxu0 %v63
    %79 = vmatmul.bf16.gmra.mxu0 %v69
    %v80 = vpop.f32.mrf.mxu0
    %v81 = vadd.f32 0.0, %v80
    %v82 = vpop.f32.mrf.mxu0
    %v83 = vadd.f32 0.0, %v82
    %84 = vdwg.mxu0
    %s85 = smul.u32 0, 128
    %v86 = vlaneseq
    %v87 = vand.u32 %v86, 127
    %v88 = vstv %s85
    %v89 = vadd.s32 %v88, %v87
    %vm90 = vcmp.lt.s32.totalorder %v89, 16
    %v91 = vsel %vm90, %v81, -1e+30
    %v92 = vsel %vm90, %v83, -1e+30
    %v93 = vld [vmem:[#allocation2] sm:$0xff]
    %v94 = vld [vmem:[#allocation2 + $0x8] sm:$0xff]
    %95 = vmax.xlane.f32.xlu0 %v91
    %v96 = vpop.xlane.xlu0 %95
    %97 = vmax.xlane.f32.xlu0 %v92
    %v98 = vpop.xlane.xlu0 %97
    %v99 = vmax.f32 %v93, %v96
    %v100 = vmax.f32 %v94, %v98
    %v101 = vsub.f32 %v93, %v99
    %v102 = vsub.f32 %v94, %v100
    %v103 = vmul.f32 %v101, 1.442695
    %v104 = vpow.pop %v103
    %v105 = vmul.f32 %v102, 1.442695
    %v106 = vpow.pop %v105
    %v107 = vld [vmem:[#allocation3] sm:$0xff]
    %v108 = vld [vmem:[#allocation3 + $0x8] sm:$0xff]
    %v109 = vmul.f32 %v104, %v107
    %v110 = vmul.f32 %v106, %v108
    %112 = vset.pattern.permute.xlu0 0
    %113 = vperm.xlu0 %112, %v99
    %v114 = vpop.permute.xlu0 %113
    %117 = vset.pattern.permute.xlu0 0
    %118 = vperm.xlu0 %117, %v100
    %v119 = vpop.permute.xlu0 %118
    %v121 = vsub.f32 %v91, %v114
    %v122 = vsub.f32 %v92, %v119
    %v123 = vmul.f32 %v121, 1.442695
    %v124 = vpow.pop %v123
    %v125 = vmul.f32 %v122, 1.442695
    %v126 = vpow.pop %v125
    %127 = vadd.xlane.f32.xlu0 %v124
    %v128 = vpop.xlane.xlu0 %127
    %129 = vadd.xlane.f32.xlu0 %v126
    %v130 = vpop.xlane.xlu0 %129
    %v131 = vadd.f32 %v109, %v128
    %v132 = vadd.f32 %v110, %v130
    %vm133 = vcmask 7168
    %134 = vst.msk [vmem:[#allocation3] sm:$0xff] %vm133, %v131
    %135 = vst.msk [vmem:[#allocation3 + $0x8] sm:$0xff] %vm133, %v132
    %136 = vst.msk [vmem:[#allocation2] sm:$0xff] %vm133, %v99
    %137 = vst.msk [vmem:[#allocation2 + $0x8] sm:$0xff] %vm133, %v100
    %v138 = vld [vmem:[#allocation4] sm:$0xff]
    %v139 = vld [vmem:[#allocation4 + $0x8] sm:$0xff]
    %v140 = vld [vmem:[%s2] sm:$0xff]
    %v141 = vld [vmem:[%s2 + $0x8] sm:$0xff]
    %142 = vset.pattern.permute.xlu0 0
    %143 = vperm.xlu0 %142, %v140
    %v144 = vpop.permute.xlu0 %143
    %145 = vset.pattern.permute.xlu0 0
    %146 = vperm.xlu0 %145, %v141
    %v147 = vpop.permute.xlu0 %146
    %vm148 = vcmp.eq.s32.totalorder %v89, %v144
    %vm149 = vcmp.eq.s32.totalorder %v89, %v147
    %v150 = vsel %vm148, %v91, 0.0
    %v151 = vsel %vm149, %v92, 0.0
    %152 = vadd.xlane.f32.xlu0 %v150
    %v153 = vpop.xlane.xlu0 %152
    %154 = vadd.xlane.f32.xlu0 %v151
    %v155 = vpop.xlane.xlu0 %154
    %v156 = vadd.f32 %v138, %v153
    %v157 = vadd.f32 %v139, %v155
    %158 = vst.msk [vmem:[#allocation4] sm:$0xff] %vm133, %v156
    %159 = vst.msk [vmem:[#allocation4 + $0x8] sm:$0xff] %vm133, %v157
    // Predicated region
    $region22: #{tpu_custom_call.1} parent=1 // pred_check
      %p160 = pneg %p33
    $region23: #{tpu_custom_call.1} parent=1 // pred_check_branch
      %162 = sbr.rel (%p160) target = $region25
    $region24: #{tpu_custom_call.1} parent=1 // pred_region
      %v163 = vld [vmem:[#allocation2] sm:$0xff]
      %v164 = vld [vmem:[#allocation2 + $0x8] sm:$0xff]
      %v165 = vld [vmem:[#allocation3] sm:$0xff]
      %v166 = vld [vmem:[#allocation3 + $0x8] sm:$0xff]
      %v167 = vlog2.pop %v165
      %v168 = vmul.f32 %v167, 0.6931472
      %v169 = vlog2.pop %v166
      %v170 = vmul.f32 %v169, 0.6931472
      %v171 = vadd.f32 %v163, %v168
      %v172 = vadd.f32 %v164, %v170
      %173 = vst.msk [vmem:[%s3] sm:$0xff] %vm133, %v171
      %174 = vst.msk [vmem:[%s3 + $0x8] sm:$0xff] %vm133, %v172
      %v175 = vld [vmem:[#allocation4] sm:$0xff]
      %v176 = vld [vmem:[#allocation4 + $0x8] sm:$0xff]
      %v177 = vsub.f32 %v171, %v175
      %v178 = vsub.f32 %v172, %v176
      %179 = vst.msk [vmem:[%s4] sm:$0xff] %vm133, %v177
      %180 = vst.msk [vmem:[%s4 + $0x8] sm:$0xff] %vm133, %v178
    $region25: #{tpu_custom_call.1} parent=1 // pred_fallthru
      _
    // Predicated region
    $region26: #{tpu_custom_call.1} parent=1 // pred_check
      _
    $region27: #{tpu_custom_call.1} parent=1 // pred_check_branch
      %182 = sbr.rel (0) target = $region29
    $region28: #{tpu_custom_call.1} parent=1 // pred_region
      _
    $region29: #{tpu_custom_call.1} parent=1 // pred_fallthru
      _
    // Predicated region
    $region30: #{tpu_custom_call.1} parent=1 // pred_check
      _
    $region31: #{tpu_custom_call.1} parent=1 // pred_check_branch
      %184 = sbr.rel (0) target = $region33
    $region32: #{tpu_custom_call.1} parent=1 // pred_region
      _
    $region33: #{tpu_custom_call.1} parent=1 // pred_fallthru
      _
    // Predicated region
    $region34: #{tpu_custom_call.1} parent=1 // pred_check
      _
    $region35: #{tpu_custom_call.1} parent=1 // pred_check_branch
      %186 = sbr.rel (0) target = $region37
    $region36: #{tpu_custom_call.1} parent=1 // pred_region
      _
    $region37: #{tpu_custom_call.1} parent=1 // pred_fallthru
      _
    // Predicated region
    $region38: #{tpu_custom_call.1} parent=1 // pred_check
      _
    $region39: #{tpu_custom_call.1} parent=1 // pred_check_branch
      %188 = sbr.rel (0) target = $region41
    $region40: #{tpu_custom_call.1} parent=1 // pred_region
      _
    $region41: #{tpu_custom_call.1} parent=1 // pred_fallthru
      _
    %189 = vsyncpa [#allocation6], 1

</llo_original>
